<compile_context>
chip_gen: v7x
topology: tpu7x:2x2x1
jax: 0.10.0
libtpu: 0.0.40
codegen_flags: <defaults>
</compile_context>

<pallas_src>
import jax
import jax.numpy as jnp
from jax.experimental import pallas as pl
from jax.experimental.pallas import tpu as pltpu


def _slice_att_kernel(w_ref, x_ref, o_ref):
    # w_ref: SMEM (Sw,) scalars; x_ref: VMEM (R, TL); o_ref: VMEM (Sw, R, TL).
    x = x_ref[...]
    for i in range(o_ref.shape[0]):          # Sw is small and static -> unrolled
        o_ref[i] = (w_ref[i] * x).astype(o_ref.dtype)


def _vmem_capacity_bytes():
    """Physical per-core VMEM; conservative fallback = v7x's 64 MiB."""
    try:
        return int(pltpu.get_tpu_info().vmem_capacity_bytes)
    except Exception:
        return 64 * 1024 * 1024


def _choose_lane_tile(L, rows_in, rows_out, itemsize, budget_bytes):
    """Largest TL (multiple of 128, dividing L) whose double-buffered in+out
    blocks fit `budget_bytes`. Blocks are sublane-dense, so padded == logical."""
    denom = 2 * (rows_in + rows_out) * itemsize      # 2 buffers x (in + out) rows
    tl_max = max(128, (budget_bytes // denom) // 128 * 128)
    if tl_max >= L:
        return L
    tl = tl_max
    while L % tl != 0:                               # L is a multiple of 128
        tl -= 128
    return tl


def glcsa_forward(x, weights):
    """GLCSAModule.forward (GLSliceAttentionModule stage)."""
    S, C, H, W = x.shape
    Sw = weights.shape[0]
    N = S * C * H * W

    itemsize = x.dtype.itemsize
    R = 8 * max(1, 4 // itemsize)          # dense sublanes: 8 f32 / 16 bf16 / 32 int8
    unit = R * 128
    N_pad = ((N + unit - 1) // unit) * unit
    L = N_pad // R                          # multiple of 128 by construction

    x_flat = x.reshape(N)
    if N_pad != N:
        x_flat = jnp.pad(x_flat, (0, N_pad - N))
    x2d = x_flat.reshape(R, L)              # sublane- and lane-dense slab
    w_flat = weights.reshape(Sw)

    # Generation-aware VMEM budgeting (v7x has half the VMEM of v5e/v6e).
    vmem_limit = min((_vmem_capacity_bytes() * 3) // 4, 96 * 1024 * 1024)
    budget = vmem_limit // 2               # headroom for scratch / internal use
    TL = _choose_lane_tile(L, R, Sw * R, itemsize, budget)
    nL = L // TL

    out2d = pl.pallas_call(
        _slice_att_kernel,
        out_shape=jax.ShapeDtypeStruct((Sw, R, L), x.dtype),
        grid=(nL,),
        in_specs=[
            pl.BlockSpec(memory_space=pltpu.SMEM),              # weights (Sw,)
            pl.BlockSpec((R, TL), lambda j: (0, j)),            # x chunk
        ],
        out_specs=pl.BlockSpec((Sw, R, TL), lambda j: (0, 0, j)),
        compiler_params=pltpu.CompilerParams(
            dimension_semantics=("parallel",),
            vmem_limit_bytes=vmem_limit,
        ),
    )(w_flat, x2d)

    # Undo padding; PyTorch broadcast: (Sw,1,1,1,1,1,1)*(S,C,H,W) -> (Sw,1,1,S,C,H,W)
    out_flat = out2d.reshape(Sw, N_pad)[:, :N]
    return out_flat.reshape(Sw, 1, 1, S, C, H, W)


if __name__ == "__main__":
    key = jax.random.PRNGKey(0)
    kx, kw = jax.random.split(key)

    num_slices, C, H, W = 2, 4, 16, 16
    x = jax.random.normal(kx, (num_slices, C, H, W), dtype=jnp.float32)

    # Module __init__ uses torch.ones(num_slices,1,1,1); keep the exact shape
    # but use deterministic non-trivial values so the scaling path is exercised.
    weights = 1.0 + 0.1 * jax.random.normal(kw, (num_slices, 1, 1, 1),
                                            dtype=jnp.float32)

    out = glcsa_forward(x, weights)
    out = jax.block_until_ready(out)

    # Pure-JAX reference mirroring the PyTorch broadcasting exactly.
    w7 = weights.reshape(num_slices, 1, 1, 1, 1, 1, 1)
    ref = w7 * x
    assert out.shape == ref.shape == (num_slices, 1, 1, num_slices, C, H, W)
    assert out.dtype == ref.dtype == jnp.float32
    assert jnp.allclose(out, ref, atol=1e-6, rtol=1e-6)

    print("KERNEL_OK")
</pallas_src>

<mosaic_0001>
module attributes {stable_mosaic.version = 11 : i64} {
  func.func @_slice_att_kernel(%arg0: i32, %arg1: memref<2xf32, #tpu.memory_space<smem>>, %arg2: memref<8x256xf32, #tpu.memory_space<vmem>>, %arg3: memref<2x8x256xf32, #tpu.memory_space<vmem>>) attributes {dimension_semantics = [#tpu.dimension_semantics<parallel>], iteration_bounds = array<i64: 1>, scalar_prefetch = 0 : i64, scratch_operands = 0 : i64, tpu.core_type = #tpu.core_type<tc>, window_params = [{transform_indices = @transform_0, window_bounds = array<i64: 2>}, {transform_indices = @transform_1, window_bounds = array<i64: 8, 256>}, {transform_indices = @transform_2, window_bounds = array<i64: 2, 8, 256>}]} {
    %c0 = arith.constant 0 : index
    %c0_0 = arith.constant 0 : index
    %0 = vector.load %arg2[%c0, %c0_0] : memref<8x256xf32, #tpu.memory_space<vmem>>, vector<8x256xf32>
    %c0_1 = arith.constant 0 : index
    %1 = memref.load %arg1[%c0_1] : memref<2xf32, #tpu.memory_space<smem>>
    %2 = vector.broadcast %1 : f32 to vector<8x256xf32>
    %3 = arith.mulf %2, %0 : vector<8x256xf32>
    %c0_2 = arith.constant 0 : index
    %c0_3 = arith.constant 0 : index
    %c0_4 = arith.constant 0 : index
    %4 = vector.load %arg3[%c0_2, %c0_3, %c0_4] : memref<2x8x256xf32, #tpu.memory_space<vmem>>, vector<1x8x256xf32>
    %5 = vector.shape_cast %4 : vector<1x8x256xf32> to vector<8x256xf32>
    %6 = vector.shape_cast %3 : vector<8x256xf32> to vector<1x8x256xf32>
    tpu.vector_store %arg3[%c0_2, %c0_3, %c0_4], %6 {strides = array<i32>} : memref<2x8x256xf32, #tpu.memory_space<vmem>>, vector<1x8x256xf32>,
    %c1 = arith.constant 1 : index
    %7 = memref.load %arg1[%c1] : memref<2xf32, #tpu.memory_space<smem>>
    %8 = vector.broadcast %7 : f32 to vector<8x256xf32>
    %9 = arith.mulf %8, %0 : vector<8x256xf32>
    %c1_5 = arith.constant 1 : index
    %c0_6 = arith.constant 0 : index
    %c0_7 = arith.constant 0 : index
    %10 = vector.load %arg3[%c1_5, %c0_6, %c0_7] : memref<2x8x256xf32, #tpu.memory_space<vmem>>, vector<1x8x256xf32>
    %11 = vector.shape_cast %10 : vector<1x8x256xf32> to vector<8x256xf32>
    %12 = vector.shape_cast %9 : vector<8x256xf32> to vector<1x8x256xf32>
    tpu.vector_store %arg3[%c1_5, %c0_6, %c0_7], %12 {strides = array<i32>} : memref<2x8x256xf32, #tpu.memory_space<vmem>>, vector<1x8x256xf32>,
    return
  }
  func.func @transform_0(%arg0: i32) -> i32 {
    %c0_i32 = arith.constant 0 : i32
    %c0_i32_0 = arith.constant 0 : i32
    return %c0_i32 : i32
  }
  func.func @transform_1(%arg0: i32) -> (i32, i32) {
    %c0_i32 = arith.constant 0 : i32
    %c0_i32_0 = arith.constant 0 : i32
    return %c0_i32, %arg0 : i32, i32
  }
  func.func @transform_2(%arg0: i32) -> (i32, i32, i32) {
    %c0_i32 = arith.constant 0 : i32
    %c0_i32_0 = arith.constant 0 : i32
    %c0_i32_1 = arith.constant 0 : i32
    return %c0_i32, %c0_i32_0, %arg0 : i32, i32, i32
  }
}

</mosaic_0001>

<llo_original>
// kernel: tpu_custom_call.1
$region0: #{tpu_custom_call.1}
  #allocation0 [shape = 'u32[]', space=smem, size = 0x4, offset = 0x4, fixed_abs, tag = 'smem constant byte address 0x4 - core index']
  #allocation1 [shape = 'u32[144,128]{1,0:T(1,128)}', space=vmem, size = 0x12000, scoped, tag = 'internal scratch']
  %s0 = inlined_call_operand.hbm [shape: f32[2], index: 0, kind: input, shape index: {}]
  %s1 = inlined_call_operand.hbm [shape: f32[8,256], index: 1, kind: input, shape index: {}]
  %s2 = inlined_call_operand.hbm [shape: f32[2,8,256], index: 2, kind: output, shape index: {}]
  %s3 = sld [smem:[#allocation0]]
  $region26: #{tpu_custom_call.1} parent=0
    _
  %s5 = ssub.s32 1, %s3
  %s6 = scalar_select 0, %s5, %s3
  $region1: #{tpu_custom_call.1} parent=0
    #allocation2 [shape = 'u8[512]{0}', space=smem, size = 0x200, scoped, tag = 'input window, operand 0, single buffered']
    #allocation3 [shape = 's32[1]{0}', space=sflag, size = 0x4, scoped, tag = 'scoped memory for tpu_custom_call.1']
    #allocation4 [shape = 's32[1]{0}', space=sflag, size = 0x4, scoped, tag = 'scoped memory for tpu_custom_call.1']
    #allocation5 [shape = 's32[1]{0}', space=sflag, size = 0x4, scoped, tag = 'scoped memory for tpu_custom_call.1']
    #allocation6 [shape = 'u8[8192]{0}', space=vmem, size = 0x2000, scoped, tag = 'input window, operand 1, single buffered']
    #allocation7 [shape = 'u8[16384]{0}', space=vmem, size = 0x4000, scoped, tag = 'output window, operand 0, single buffered']
    %7 = vsyncpa [#allocation5], 0
    %8 = vsyncpa [#allocation3], 0
    %9 = vsyncpa [#allocation4], 0
    // Predicated region
    $region2: #{tpu_custom_call.1} parent=1 // pred_check
      _
    $region3: #{tpu_custom_call.1} parent=1 // pred_check_branch
      %11 = sbr.rel (0) target = $region5
    $region4: #{tpu_custom_call.1} parent=1 // pred_region
      %s13 = ssub.s32 16, 16
      %14 = vsyncadd [#allocation5], %s13
      %17 = dma.hbm_to_smem %s0, 16, [#allocation2], [#allocation5]
    $region5: #{tpu_custom_call.1} parent=1 // pred_fallthru
      _
    // Predicated region
    $region6: #{tpu_custom_call.1} parent=1 // pred_check
      _
    $region7: #{tpu_custom_call.1} parent=1 // pred_check_branch
      %19 = sbr.rel (0) target = $region9
    $region8: #{tpu_custom_call.1} parent=1 // pred_region
      %s21 = ssub.s32 256, 256
      %22 = vsyncadd [#allocation3], %s21
      %s24 = sshll.u32 [#allocation6], 4
      %s25 = int_to_ptr.vmem [resolvable:$true] %s24
      %27 = dma.hbm_to_vmem [thread:$0]  %s1, 256, %s25, [#allocation3]
    $region9: #{tpu_custom_call.1} parent=1 // pred_fallthru
      _
    // Predicated region
    $region10: #{tpu_custom_call.1} parent=1 // pred_check
      _
    $region11: #{tpu_custom_call.1} parent=1 // pred_check_branch
      %29 = sbr.rel (0) target = $region13
    $region12: #{tpu_custom_call.1} parent=1 // pred_region
      %30 = dma.done [#allocation5], 16
    $region13: #{tpu_custom_call.1} parent=1 // pred_fallthru
      _
    // Predicated region
    $region14: #{tpu_custom_call.1} parent=1 // pred_check
      _
    $region15: #{tpu_custom_call.1} parent=1 // pred_check_branch
      %32 = sbr.rel (0) target = $region17
    $region16: #{tpu_custom_call.1} parent=1 // pred_region
      %33 = dma.done [#allocation3], 256
    $region17: #{tpu_custom_call.1} parent=1 // pred_fallthru
      _
    %34 = sfence
    %v35 = vld [vmem:[#allocation6] sm:$0xff]
    %v36 = vld [vmem:[#allocation6 + $0x8] sm:$0xff]
    %s37 = sld [smem:[#allocation2]]
    %v38 = vstv %s37
    %v39 = vmul.f32 %v38, %v35
    %v40 = vmul.f32 %v38, %v36
    %41 = vst [vmem:[#allocation7] sm:$0xff] %v39
    %42 = vst [vmem:[#allocation7 + $0x8] sm:$0xff] %v40
    %s43 = sld [smem:[#allocation2 + $0x1]]
    %v44 = vstv %s43
    %v45 = vmul.f32 %v44, %v35
    %v46 = vmul.f32 %v44, %v36
    %s47 = scalar_lea.vmem [#allocation7], 16
    %48 = vst [vmem:[%s47] sm:$0xff] %v45
    %49 = vst [vmem:[%s47 + $0x8] sm:$0xff] %v46
    // Predicated region
    $region18: #{tpu_custom_call.1} parent=1 // pred_check
      _
    $region19: #{tpu_custom_call.1} parent=1 // pred_check_branch
      %51 = sbr.rel (0) target = $region21
    $region20: #{tpu_custom_call.1} parent=1 // pred_region
      %s53 = ssub.s32 512, 512
      %54 = vsyncadd [#allocation4], %s53
      %s55 = sshll.u32 [#allocation7], 4
      %s56 = int_to_ptr.vmem [resolvable:$true] %s55
      %61 = dma.vmem_to_hbm [thread:$0]  %s56, 512, %s2, [#allocation4], 256, 256, 16
    $region21: #{tpu_custom_call.1} parent=1 // pred_fallthru
      _
    // Predicated region
    $region22: #{tpu_custom_call.1} parent=1 // pred_check
      _
    $region23: #{tpu_custom_call.1} parent=1 // pred_check_branch
      %63 = sbr.rel (0) target = $region25
    $region24: #{tpu_custom_call.1} parent=1 // pred_region
      %64 = dma.done [#allocation4], 512
    $region25: #{tpu_custom_call.1} parent=1 // pred_fallthru
      _
    %65 = vsyncpa [#allocation3], 1
    %66 = vsyncpa [#allocation4], 1
    %67 = vsyncpa [#allocation5], 1

</llo_original>
